<compile_context>
chip_gen: v7x
topology: tpu7x:2x2x1
jax: 0.10.0
libtpu: 0.0.40
codegen_flags: <defaults>
</compile_context>

<pallas_src>
import math
import functools

import jax
import jax.numpy as jnp
from jax.experimental import pallas as pl
from jax.experimental.pallas import tpu as pltpu


# ----------------------------------------------------------------------------- 
# Sinusoidal PE table (matches the PyTorch module's buffer).
# ----------------------------------------------------------------------------- 
def _make_pe(max_length: int, embedding_size: int) -> jnp.ndarray:
    position = jnp.arange(max_length, dtype=jnp.float32)[:, None]          # (L, 1)
    div_term = jnp.exp(
        jnp.arange(0, embedding_size, 2, dtype=jnp.float32)
        * (-math.log(10000.0) / embedding_size)
    )                                                                      # (E//2,)
    pe = jnp.zeros((max_length, embedding_size), dtype=jnp.float32)
    pe = pe.at[:, 0::2].set(jnp.sin(position * div_term))
    pe = pe.at[:, 1::2].set(jnp.cos(position * div_term))
    return pe


# ----------------------------------------------------------------------------- 
# Tiling / VMEM helpers.
# ----------------------------------------------------------------------------- 
_MIN_BLOCK_BYTES = 1 << 20   # keep blocks >= ~1 MiB when splitting for grid length


def _round_up(x: int, m: int) -> int:
    return (x + m - 1) // m * m


def _vmem_budget_and_limit():
    """Generation-aware (working-set budget, scoped-VMEM limit) in bytes."""
    phys = 64 << 20                      # conservative fallback = v7x per-TC VMEM
    try:
        info = pltpu.get_tpu_info()
        phys = int(getattr(info, "vmem_capacity_bytes", phys)) or phys
    except Exception:
        pass
    # Request at most half of physical VMEM (v5e/v6e: 64 MiB, v7x: 32 MiB) so
    # Mosaic internal scratch always has room; raising the limit explicitly
    # also sidesteps v5e's 16 MiB default scoped limit.
    limit = min(phys // 2, 64 << 20)
    budget = max(limit - (8 << 20), 8 << 20)
    return budget, limit


def _lane_fold(S: int, E: int) -> int:
    """Fold factor g: reshape (S, E) -> (S//g, g*E) so the last dim is a
    multiple of 128 (lane-dense, unmasked stores). g=1 when E already is, or
    when S does not admit the fold."""
    if E % 128 == 0:
        return 1
    g = 128 // math.gcd(E, 128)
    return g if S % g == 0 else 1


def _choose_tiles(B: int, S: int, E: int, itemsize: int, budget: int):
    """Pick (b_tile, s_tile) so the *padded*, double-buffered working set fits
    `budget`, blocks use full sublanes, and the grid has >= 4 steps when the
    problem is large enough."""
    sub_x = {4: 8, 2: 16, 1: 32}.get(itemsize, 8)   # sublane tile for x dtype
    lanes = _round_up(E, 128)                       # lane padding of last dim

    def x_block_bytes(b_t, s_t):
        return b_t * _round_up(s_t, sub_x) * lanes * itemsize

    def working_set(b_t, s_t):
        xb = x_block_bytes(b_t, s_t)                # x block, padded
        ob = xb                                     # out block, same dtype
        pb = _round_up(s_t, 8) * lanes * 4          # f32 PE block, padded
        return 2 * (xb + ob + pb)                   # double-buffered

    # Sequence-tile candidates: divisors of S that are multiples of the
    # sublane tile (full-sublane blocks); S itself is always a legal fallback.
    s_cands = [s for s in range(S, 0, -1) if S % s == 0 and s % sub_x == 0]
    if not s_cands or s_cands[0] != S:
        s_cands = [S] + s_cands
    b_cands = [b for b in range(B, 0, -1) if B % b == 0]

    for b_t in b_cands:                             # prefer whole batch / block
        fitting = [s for s in s_cands if working_set(b_t, s) <= budget]
        if not fitting:
            continue
        s_t = fitting[0]                            # largest fitting block
        # Split the sequence axis until >= 4 grid steps (v7x megacore + DMA
        # pipelining), but never below ~1 MiB per block (HBM roofline regime).
        for s_next in fitting[1:]:
            if (S // s_t) * (B // b_t) >= 4:
                break
            if x_block_bytes(b_t, s_next) < _MIN_BLOCK_BYTES:
                break
            s_t = s_next
        return b_t, s_t

    # Nothing fits even with b_tile=1 (extreme E with tiny S): smallest blocks,
    # rely on the raised vmem_limit_bytes.
    return 1, s_cands[-1]


# ----------------------------------------------------------------------------- 
# Kernel.
# ----------------------------------------------------------------------------- 
def _pe_kernel(x_ref, pe_ref, o_ref, *, scale):
    # x_ref/o_ref: (b_tile, s_tile, E); pe_ref: (s_tile, E) float32.
    # Fused VPU mul-add in f32, broadcast PE over batch, downcast to out dtype.
    x = x_ref[...].astype(jnp.float32)
    o_ref[...] = (x * scale + pe_ref[...][None, :, :]).astype(o_ref.dtype)


def positional_encoding_forward(x: jnp.ndarray, pe_seq: jnp.ndarray,
                                *, donate_x: bool = False) -> jnp.ndarray:
    """x: (B, S, E); pe_seq: (S, E) sinusoidal table (slice pe[:S] once per
    sequence length and reuse — it is static). Returns x*sqrt(E)+pe in x.dtype.

    donate_x=True adds input/output aliasing; it only actually saves the
    output allocation if the caller donates x under jit."""
    B, S, E = x.shape
    assert pe_seq.shape == (S, E), (pe_seq.shape, (S, E))
    scale = float(math.sqrt(E))

    # Lane-density fold: (B, S, E) -> (B, S//g, g*E); contiguous reshape, no copy.
    g = _lane_fold(S, E)
    Sf, Ef = S // g, E * g
    x_f = x.reshape(B, Sf, Ef)
    pe_f = pe_seq.reshape(Sf, Ef).astype(jnp.float32)

    budget, vmem_limit = _vmem_budget_and_limit()
    b_tile, s_tile = _choose_tiles(B, Sf, Ef, x.dtype.itemsize, budget)

    # Batch is the innermost grid axis: the PE block index is constant across
    # it, so the PE tile is DMA'd from HBM once per sequence tile (S*E total).
    grid = (Sf // s_tile, B // b_tile)

    out = pl.pallas_call(
        functools.partial(_pe_kernel, scale=scale),
        out_shape=jax.ShapeDtypeStruct((B, Sf, Ef), x.dtype),
        grid_spec=pltpu.PrefetchScalarGridSpec(
            num_scalar_prefetch=0,
            grid=grid,
            in_specs=[
                pl.BlockSpec((b_tile, s_tile, Ef), lambda s, b: (b, s, 0)),
                pl.BlockSpec((s_tile, Ef), lambda s, b: (s, 0)),
            ],
            out_specs=pl.BlockSpec((b_tile, s_tile, Ef), lambda s, b: (b, s, 0)),
        ),
        compiler_params=pltpu.CompilerParams(
            dimension_semantics=("parallel", "parallel"),
            vmem_limit_bytes=vmem_limit,
        ),
        input_output_aliases=({0: 0} if donate_x else {}),
    )(x_f, pe_f)

    return out.reshape(B, S, E)


if __name__ == "__main__":
    # Small shapes consistent with the module's forward: x is (batch, seq, embedding).
    batch, seq_len, embedding_size, max_length = 2, 8, 32, 16

    key = jax.random.PRNGKey(0)
    x = jax.random.normal(key, (batch, seq_len, embedding_size), dtype=jnp.float32)

    pe_full = _make_pe(max_length, embedding_size)
    pe_seq = pe_full[:seq_len]          # hoisted once per sequence length (static)

    out = positional_encoding_forward(x, pe_seq)
    out = jax.block_until_ready(out)

    # Reference check (pure JAX) to validate semantics.
    ref = x * math.sqrt(embedding_size) + pe_full[None, :seq_len, :]
    assert out.shape == (batch, seq_len, embedding_size)
    assert jnp.allclose(out, ref, atol=1e-5, rtol=1e-5)

    print("KERNEL_OK")
</pallas_src>

<mosaic_0001>
module attributes {stable_mosaic.version = 11 : i64} {
  func.func @_pe_kernel(%arg0: i32, %arg1: i32, %arg2: memref<2x2x128xf32, #tpu.memory_space<vmem>>, %arg3: memref<2x128xf32, #tpu.memory_space<vmem>>, %arg4: memref<2x2x128xf32, #tpu.memory_space<vmem>>) attributes {dimension_semantics = [#tpu.dimension_semantics<parallel>, #tpu.dimension_semantics<parallel>], iteration_bounds = array<i64: 1, 1>, scalar_prefetch = 0 : i64, scratch_operands = 0 : i64, tpu.core_type = #tpu.core_type<tc>, window_params = [{transform_indices = @transform_0, window_bounds = array<i64: 2, 2, 128>}, {transform_indices = @transform_1, window_bounds = array<i64: 2, 128>}, {transform_indices = @transform_2, window_bounds = array<i64: 2, 2, 128>}]} {
    %c0 = arith.constant 0 : index
    %c0_0 = arith.constant 0 : index
    %c0_1 = arith.constant 0 : index
    %0 = vector.load %arg2[%c0, %c0_0, %c0_1] : memref<2x2x128xf32, #tpu.memory_space<vmem>>, vector<2x2x128xf32>
    %cst = arith.constant 5.65685415 : f32
    %1 = vector.broadcast %cst : f32 to vector<2x2x128xf32>
    %2 = arith.mulf %0, %1 : vector<2x2x128xf32>
    %c0_2 = arith.constant 0 : index
    %c0_3 = arith.constant 0 : index
    %3 = vector.load %arg3[%c0_2, %c0_3] : memref<2x128xf32, #tpu.memory_space<vmem>>, vector<2x128xf32>
    %4 = vector.shape_cast %3 : vector<2x128xf32> to vector<1x2x128xf32>
    %5 = vector.broadcast %4 : vector<1x2x128xf32> to vector<2x2x128xf32>
    %6 = arith.addf %2, %5 : vector<2x2x128xf32>
    %c0_4 = arith.constant 0 : index
    %c0_5 = arith.constant 0 : index
    %c0_6 = arith.constant 0 : index
    %7 = vector.load %arg4[%c0_4, %c0_5, %c0_6] : memref<2x2x128xf32, #tpu.memory_space<vmem>>, vector<2x2x128xf32>
    tpu.vector_store %arg4[%c0_4, %c0_5, %c0_6], %6 {strides = array<i32>} : memref<2x2x128xf32, #tpu.memory_space<vmem>>, vector<2x2x128xf32>,
    return
  }
  func.func @transform_0(%arg0: i32, %arg1: i32) -> (i32, i32, i32) {
    %c0_i32 = arith.constant 0 : i32
    %c0_i32_0 = arith.constant 0 : i32
    return %arg1, %arg0, %c0_i32 : i32, i32, i32
  }
  func.func @transform_1(%arg0: i32, %arg1: i32) -> (i32, i32) {
    %c0_i32 = arith.constant 0 : i32
    %c0_i32_0 = arith.constant 0 : i32
    return %arg0, %c0_i32 : i32, i32
  }
  func.func @transform_2(%arg0: i32, %arg1: i32) -> (i32, i32, i32) {
    %c0_i32 = arith.constant 0 : i32
    %c0_i32_0 = arith.constant 0 : i32
    return %arg1, %arg0, %c0_i32 : i32, i32, i32
  }
}

</mosaic_0001>

<llo_original>
// kernel: tpu_custom_call.1
$region0: #{tpu_custom_call.1}
  #allocation0 [shape = 'u32[]', space=smem, size = 0x4, offset = 0x4, fixed_abs, tag = 'smem constant byte address 0x4 - core index']
  #allocation1 [shape = 'u32[144,128]{1,0:T(1,128)}', space=vmem, size = 0x12000, scoped, tag = 'internal scratch']
  %s0 = inlined_call_operand.hbm [shape: f32[2,2,128], index: 0, kind: input, shape index: {}]
  %s1 = inlined_call_operand.vmem [shape: f32[2,128], index: 1, kind: input, shape index: {}]
  %s2 = inlined_call_operand.hbm [shape: f32[2,2,128], index: 2, kind: output, shape index: {}]
  %s3 = sld [smem:[#allocation0]]
  $region22: #{tpu_custom_call.1} parent=0
    _
  %s5 = ssub.s32 1, %s3
  %s6 = scalar_select 0, %s5, %s3
  $region1: #{tpu_custom_call.1} parent=0
    #allocation2 [shape = 'u8[2048]{0}', space=vmem, size = 0x800, scoped, tag = 'input window, operand 0, single buffered']
    #allocation3 [shape = 's32[1]{0}', space=sflag, size = 0x4, scoped, tag = 'scoped memory for tpu_custom_call.1']
    #allocation4 [shape = 's32[1]{0}', space=sflag, size = 0x4, scoped, tag = 'scoped memory for tpu_custom_call.1']
    #allocation5 [shape = 'u8[2048]{0}', space=vmem, size = 0x800, scoped, tag = 'output window, operand 0, single buffered']
    %7 = vsyncpa [#allocation3], 0
    %8 = vsyncpa [#allocation4], 0
    // Predicated region
    $region2: #{tpu_custom_call.1} parent=1 // pred_check
      _
    $region3: #{tpu_custom_call.1} parent=1 // pred_check_branch
      %10 = sbr.rel (0) target = $region5
    $region4: #{tpu_custom_call.1} parent=1 // pred_region
      %s12 = ssub.s32 64, 64
      %13 = vsyncadd [#allocation3], %s12
      %s14 = sshll.u32 [#allocation2], 4
      %s15 = int_to_ptr.vmem [resolvable:$true] %s14
      %20 = dma.hbm_to_vmem [thread:$0]  %s0, 64, %s15, [#allocation3], 32, 32, 2
    $region5: #{tpu_custom_call.1} parent=1 // pred_fallthru
      _
    // Predicated region
    $region6: #{tpu_custom_call.1} parent=1 // pred_check
      _
    $region7: #{tpu_custom_call.1} parent=1 // pred_check_branch
      %22 = sbr.rel (0) target = $region9
    $region8: #{tpu_custom_call.1} parent=1 // pred_region
      _
    $region9: #{tpu_custom_call.1} parent=1 // pred_fallthru
      _
    // Predicated region
    $region10: #{tpu_custom_call.1} parent=1 // pred_check
      _
    $region11: #{tpu_custom_call.1} parent=1 // pred_check_branch
      %24 = sbr.rel (0) target = $region13
    $region12: #{tpu_custom_call.1} parent=1 // pred_region
      %25 = dma.done [#allocation3], 64
    $region13: #{tpu_custom_call.1} parent=1 // pred_fallthru
      _
    %v26 = vld [vmem:[#allocation2] sm:$0x3]
    %v27 = vld [vmem:[#allocation2 + $0x2] sm:$0x3]
    %v28 = vmul.f32 %v26, 5.656854
    %v29 = vmul.f32 %v27, 5.656854
    %v30 = vld [vmem:[%s1] sm:$0x3]
    %v31 = vadd.f32 %v28, %v30
    %v32 = vadd.f32 %v29, %v30
    %33 = vst [vmem:[#allocation5] sm:$0x3] %v31
    %34 = vst [vmem:[#allocation5 + $0x2] sm:$0x3] %v32
    // Predicated region
    $region14: #{tpu_custom_call.1} parent=1 // pred_check
      _
    $region15: #{tpu_custom_call.1} parent=1 // pred_check_branch
      %36 = sbr.rel (0) target = $region17
    $region16: #{tpu_custom_call.1} parent=1 // pred_region
      %s38 = ssub.s32 64, 64
      %39 = vsyncadd [#allocation4], %s38
      %s40 = sshll.u32 [#allocation5], 4
      %s41 = int_to_ptr.vmem [resolvable:$true] %s40
      %46 = dma.vmem_to_hbm [thread:$0]  %s41, 64, %s2, [#allocation4], 32, 32, 2
    $region17: #{tpu_custom_call.1} parent=1 // pred_fallthru
      _
    // Predicated region
    $region18: #{tpu_custom_call.1} parent=1 // pred_check
      _
    $region19: #{tpu_custom_call.1} parent=1 // pred_check_branch
      %48 = sbr.rel (0) target = $region21
    $region20: #{tpu_custom_call.1} parent=1 // pred_region
      %49 = dma.done [#allocation4], 64
    $region21: #{tpu_custom_call.1} parent=1 // pred_fallthru
      _
    %50 = vsyncpa [#allocation3], 1
    %51 = vsyncpa [#allocation4], 1

</llo_original>
